<compile_context>
chip_gen: v7x
topology: tpu7x:2x2x1
jax: 0.10.0
libtpu: 0.0.40
codegen_flags: <defaults>
</compile_context>

<pallas_src>
import functools

import jax
import jax.numpy as jnp
from jax.experimental import pallas as pl
from jax.experimental.pallas import tpu as pltpu

_LANE = 128
_SUBLANE = 8


def _round_up(x: int, m: int) -> int:
    return (x + m - 1) // m * m


def _pick_batch_tiling(batch: int):
    """(tile_rows, n_grid_steps).

    >=256 rows per step keeps the MXU pipeline busy and amortizes the
    ~0.35us per-grid-step overhead.  For B<=512 use a single step with the
    full (possibly unaligned) batch as the block — the full-array-dim
    exception to the (8,128) rule means no padding is needed at all.
    """
    if batch <= 512:
        return batch, 1
    n_steps = -(-batch // 512)                        # cdiv
    tb = _round_up(-(-batch // n_steps), _SUBLANE)    # minimal ragged padding
    return tb, n_steps


def _single_buffer_kwargs():
    """Trace-time capability check for pipeline_mode=pl.Buffered(1).

    Never wraps kernel execution, so genuine compile/runtime errors are not
    masked by a silent fallback."""
    if not hasattr(pl, "Buffered"):
        return {}
    try:
        pl.BlockSpec((8, 128), lambda i: (0, 0), pipeline_mode=pl.Buffered(1))
    except TypeError:
        return {}
    return {"pipeline_mode": pl.Buffered(1)}


def _deepmoji_kernel(x_ref, w1_ref, b1_ref, w2_ref, b2_ref, w3_ref, b3_ref,
                     o_ref, *, af):
    # Cast x to the weight dtype *inside* the kernel (no extra HBM pass).
    x = x_ref[...].astype(w1_ref.dtype)
    # dense1 + AF (tanh by default; relu supported like the torch module)
    z1 = jnp.dot(x, w1_ref[...],
                 preferred_element_type=jnp.float32) + b1_ref[...]
    h1 = jnp.tanh(z1) if af == "tanh" else jnp.maximum(z1, 0.0)
    # dense2 + tanh (bf16 recast adjacent to the dot; f32 accumulation)
    z2 = jnp.dot(h1.astype(w2_ref.dtype), w2_ref[...],
                 preferred_element_type=jnp.float32) + b2_ref[...]
    h2 = jnp.tanh(z2)
    # dense3 (no activation) — unpadded num_classes lane dim
    out = jnp.dot(h2.astype(w3_ref.dtype), w3_ref[...],
                  preferred_element_type=jnp.float32) + b3_ref[...]
    o_ref[...] = out.astype(o_ref.dtype)


def prepare_deepmoji_params(w1, b1, w2, b2, w3, b3, *,
                            compute_dtype=jnp.bfloat16):
    """Pad the hidden dim to a lane multiple and cast weights to bf16 ONCE.

    Weights are constant across forward calls — cache the returned tuple in
    serving loops instead of re-running this per call."""
    E, H = w1.shape
    C = w3.shape[1]
    H_p = _round_up(H, _LANE)

    def pad2(a, rows, cols, dtype):
        return jnp.pad(
            a, ((0, rows - a.shape[0]), (0, cols - a.shape[1]))).astype(dtype)

    w1_p = pad2(w1, E, H_p, compute_dtype)                      # (E,   H_p)
    w2_p = pad2(w2, H_p, H_p, compute_dtype)                    # (H_p, H_p)
    w3_p = pad2(w3, H_p, C, compute_dtype)                      # (H_p, C)  unpadded C
    b1_p = pad2(jnp.reshape(b1, (1, -1)), 1, H_p, jnp.float32)  # (1, H_p)
    b2_p = pad2(jnp.reshape(b2, (1, -1)), 1, H_p, jnp.float32)  # (1, H_p)
    b3_p = jnp.reshape(b3, (1, -1)).astype(jnp.float32)         # (1, C)
    return (w1_p, b1_p, w2_p, b2_p, w3_p, b3_p)


def deepmoji_forward_prepared(x, params, *, af="tanh", out_dtype=jnp.float32):
    w1_p, b1_p, w2_p, b2_p, w3_p, b3_p = params
    B, E = x.shape
    E_w, H_p = w1_p.shape
    assert E_w == E, (E_w, E)
    C = w3_p.shape[1]

    tb, n_steps = _pick_batch_tiling(B)
    B_p = tb * n_steps
    if B_p != B:  # ragged batch only; no lane padding, no dtype cast
        x = jnp.pad(x, ((0, B_p - B), (0, 0)))

    wkw = _single_buffer_kwargs()
    x_itemsize = jnp.dtype(x.dtype).itemsize
    out_itemsize = jnp.dtype(out_dtype).itemsize
    param_bytes = int(sum(a.size * a.dtype.itemsize for a in params))

    # VMEM budget from the actual resident set (+headroom), never the full
    # 64 MiB physical VMEM of a v7x TensorCore.
    resident = (param_bytes
                + 2 * tb * E * x_itemsize       # double-buffered x tile
                + 2 * tb * C * out_itemsize     # double-buffered out tile
                + 2 * tb * H_p * 4)             # h1/h2 f32 intermediates
    vmem_limit = int(min(max(2 * resident + (4 << 20), 16 << 20), 48 << 20))

    cost = pl.CostEstimate(
        flops=2 * B_p * (E * H_p + H_p * H_p + H_p * C),
        transcendentals=2 * B_p * H_p,
        bytes_accessed=int(B_p * E * x_itemsize + param_bytes
                           + B_p * C * out_itemsize),
    )

    out_p = pl.pallas_call(
        functools.partial(_deepmoji_kernel, af=af),
        out_shape=jax.ShapeDtypeStruct((B_p, C), out_dtype),
        grid_spec=pltpu.PrefetchScalarGridSpec(
            num_scalar_prefetch=0,
            grid=(n_steps,),
            in_specs=[
                pl.BlockSpec((tb, E), lambda i: (i, 0)),            # x (streamed)
                pl.BlockSpec((E, H_p), lambda i: (0, 0), **wkw),    # W1 (resident)
                pl.BlockSpec((1, H_p), lambda i: (0, 0), **wkw),    # b1
                pl.BlockSpec((H_p, H_p), lambda i: (0, 0), **wkw),  # W2
                pl.BlockSpec((1, H_p), lambda i: (0, 0), **wkw),    # b2
                pl.BlockSpec((H_p, C), lambda i: (0, 0), **wkw),    # W3 (unpadded C)
                pl.BlockSpec((1, C), lambda i: (0, 0), **wkw),      # b3
            ],
            out_specs=pl.BlockSpec((tb, C), lambda i: (i, 0)),
        ),
        compiler_params=pltpu.CompilerParams(
            # "parallel" lets the runtime shard batch steps across TCs on
            # multi-TC parts (v7x); on 1-TC chips a small batch is a single
            # step so there is no per-step overhead to pay.
            # TODO(synk): evaluate pltpu.CORE_PARALLEL on v7x deployments.
            dimension_semantics=("parallel",),
            vmem_limit_bytes=vmem_limit,
        ),
        cost_estimate=cost,
    )(x, w1_p, b1_p, w2_p, b2_p, w3_p, b3_p)

    return out_p if B_p == B else out_p[:B]


def deepmoji_forward(x, w1, b1, w2, b2, w3, b3, *, af="tanh",
                     compute_dtype=jnp.bfloat16, out_dtype=jnp.float32):
    params = prepare_deepmoji_params(w1, b1, w2, b2, w3, b3,
                                     compute_dtype=compute_dtype)
    return deepmoji_forward_prepared(x, params, af=af, out_dtype=out_dtype)


def reference_forward(x, w1, b1, w2, b2, w3, b3):
    h1 = jnp.tanh(x @ w1 + b1)
    h2 = jnp.tanh(h1 @ w2 + b2)
    return h2 @ w3 + b3


if __name__ == "__main__":
    # Small shapes implied by the module: (batch, emb_size) -> num_classes.
    batch = 64
    emb_size = 64
    hidden_size = 64
    num_classes = 8

    key = jax.random.PRNGKey(0)
    kx, k1, k2, k3, k4, k5, k6 = jax.random.split(key, 7)

    x = jax.random.normal(kx, (batch, emb_size), dtype=jnp.float32)

    # Deterministic synthetic parameters (torch.nn.Linear-like uniform init).
    def lin_init(kw, kb, fan_in, fan_out):
        bound = 1.0 / float(fan_in) ** 0.5
        w = jax.random.uniform(kw, (fan_in, fan_out), jnp.float32, -bound, bound)
        b = jax.random.uniform(kb, (fan_out,), jnp.float32, -bound, bound)
        return w, b

    w1, b1 = lin_init(k1, k2, emb_size, hidden_size)
    w2, b2 = lin_init(k3, k4, hidden_size, hidden_size)
    w3, b3 = lin_init(k5, k6, hidden_size, num_classes)

    # Prepare (pad + cast) weights ONCE, then run the fused forward.
    params = prepare_deepmoji_params(w1, b1, w2, b2, w3, b3)
    out = deepmoji_forward_prepared(x, params)
    out = jax.block_until_ready(out)

    ref = reference_forward(x, w1, b1, w2, b2, w3, b3)
    assert out.shape == (batch, num_classes), out.shape
    # bf16 operands with f32 accumulation -> compare to the f32 reference with
    # a tolerance sized for bf16 rounding at these magnitudes.
    max_err = float(jnp.max(jnp.abs(out - ref)))
    assert jnp.allclose(out, ref, atol=3e-2, rtol=3e-2), max_err

    print("KERNEL_OK")
</pallas_src>

<mosaic_0001>
module attributes {stable_mosaic.version = 11 : i64} {
  func.func @_deepmoji_kernel(%arg0: i32, %arg1: memref<64x64xf32, #tpu.memory_space<vmem>>, %arg2: memref<64x128xbf16, #tpu.memory_space<vmem>>, %arg3: memref<1x128xf32, #tpu.memory_space<vmem>>, %arg4: memref<128x128xbf16, #tpu.memory_space<vmem>>, %arg5: memref<1x128xf32, #tpu.memory_space<vmem>>, %arg6: memref<128x8xbf16, #tpu.memory_space<vmem>>, %arg7: memref<1x8xf32, #tpu.memory_space<vmem>>, %arg8: memref<64x8xf32, #tpu.memory_space<vmem>>) attributes {dimension_semantics = [#tpu.dimension_semantics<parallel>], iteration_bounds = array<i64: 1>, scalar_prefetch = 0 : i64, scratch_operands = 0 : i64, tpu.core_type = #tpu.core_type<tc>, window_params = [{transform_indices = @transform_0, window_bounds = array<i64: 64, 64>}, {pipeline_mode = #tpu.pipeline_mode<synchronous>, transform_indices = @transform_1, window_bounds = array<i64: 64, 128>}, {pipeline_mode = #tpu.pipeline_mode<synchronous>, transform_indices = @transform_2, window_bounds = array<i64: 1, 128>}, {pipeline_mode = #tpu.pipeline_mode<synchronous>, transform_indices = @transform_3, window_bounds = array<i64: 128, 128>}, {pipeline_mode = #tpu.pipeline_mode<synchronous>, transform_indices = @transform_4, window_bounds = array<i64: 1, 128>}, {pipeline_mode = #tpu.pipeline_mode<synchronous>, transform_indices = @transform_5, window_bounds = array<i64: 128, 8>}, {pipeline_mode = #tpu.pipeline_mode<synchronous>, transform_indices = @transform_6, window_bounds = array<i64: 1, 8>}, {transform_indices = @transform_7, window_bounds = array<i64: 64, 8>}]} {
    %c0 = arith.constant 0 : index
    %c0_0 = arith.constant 0 : index
    %0 = vector.load %arg1[%c0, %c0_0] : memref<64x64xf32, #tpu.memory_space<vmem>>, vector<64x64xf32>
    %1 = arith.truncf %0 : vector<64x64xf32> to vector<64x64xbf16>
    %c0_1 = arith.constant 0 : index
    %c0_2 = arith.constant 0 : index
    %2 = vector.load %arg2[%c0_1, %c0_2] : memref<64x128xbf16, #tpu.memory_space<vmem>>, vector<64x128xbf16>
    %cst = arith.constant dense<0.000000e+00> : vector<64x128xf32>
    %3 = tpu.matmul %1, %2, %cst {dimension_numbers = #tpu.dot_dimension_numbers<[1], [0], [0], [1], [0, 0, 1, 1], [], []>} : vector<64x64xbf16>, vector<64x128xbf16>, vector<64x128xf32> -> vector<64x128xf32>
    %c0_3 = arith.constant 0 : index
    %c0_4 = arith.constant 0 : index
    %4 = vector.load %arg3[%c0_3, %c0_4] : memref<1x128xf32, #tpu.memory_space<vmem>>, vector<1x128xf32>
    %5 = vector.broadcast %4 : vector<1x128xf32> to vector<64x128xf32>
    %6 = arith.addf %3, %5 : vector<64x128xf32>
    %7 = math.tanh %6 : vector<64x128xf32>
    %8 = arith.truncf %7 : vector<64x128xf32> to vector<64x128xbf16>
    %c0_5 = arith.constant 0 : index
    %c0_6 = arith.constant 0 : index
    %9 = vector.load %arg4[%c0_5, %c0_6] : memref<128x128xbf16, #tpu.memory_space<vmem>>, vector<128x128xbf16>
    %cst_7 = arith.constant dense<0.000000e+00> : vector<64x128xf32>
    %10 = tpu.matmul %8, %9, %cst_7 {dimension_numbers = #tpu.dot_dimension_numbers<[1], [0], [0], [1], [0, 0, 1, 1], [], []>} : vector<64x128xbf16>, vector<128x128xbf16>, vector<64x128xf32> -> vector<64x128xf32>
    %c0_8 = arith.constant 0 : index
    %c0_9 = arith.constant 0 : index
    %11 = vector.load %arg5[%c0_8, %c0_9] : memref<1x128xf32, #tpu.memory_space<vmem>>, vector<1x128xf32>
    %12 = vector.broadcast %11 : vector<1x128xf32> to vector<64x128xf32>
    %13 = arith.addf %10, %12 : vector<64x128xf32>
    %14 = math.tanh %13 : vector<64x128xf32>
    %15 = arith.truncf %14 : vector<64x128xf32> to vector<64x128xbf16>
    %c0_10 = arith.constant 0 : index
    %c0_11 = arith.constant 0 : index
    %16 = vector.load %arg6[%c0_10, %c0_11] : memref<128x8xbf16, #tpu.memory_space<vmem>>, vector<128x8xbf16>
    %cst_12 = arith.constant dense<0.000000e+00> : vector<64x8xf32>
    %17 = tpu.matmul %15, %16, %cst_12 {dimension_numbers = #tpu.dot_dimension_numbers<[1], [0], [0], [1], [0, 0, 1, 1], [], []>} : vector<64x128xbf16>, vector<128x8xbf16>, vector<64x8xf32> -> vector<64x8xf32>
    %c0_13 = arith.constant 0 : index
    %c0_14 = arith.constant 0 : index
    %18 = vector.load %arg7[%c0_13, %c0_14] : memref<1x8xf32, #tpu.memory_space<vmem>>, vector<1x8xf32>
    %19 = vector.broadcast %18 : vector<1x8xf32> to vector<64x8xf32>
    %20 = arith.addf %17, %19 : vector<64x8xf32>
    %c0_15 = arith.constant 0 : index
    %c0_16 = arith.constant 0 : index
    %21 = vector.load %arg8[%c0_15, %c0_16] : memref<64x8xf32, #tpu.memory_space<vmem>>, vector<64x8xf32>
    tpu.vector_store %arg8[%c0_15, %c0_16], %20 {strides = array<i32>} : memref<64x8xf32, #tpu.memory_space<vmem>>, vector<64x8xf32>,
    return
  }
  func.func @transform_0(%arg0: i32) -> (i32, i32) {
    %c0_i32 = arith.constant 0 : i32
    %c0_i32_0 = arith.constant 0 : i32
    return %arg0, %c0_i32 : i32, i32
  }
  func.func @transform_1(%arg0: i32) -> (i32, i32) {
    %c0_i32 = arith.constant 0 : i32
    %c0_i32_0 = arith.constant 0 : i32
    %c0_i32_1 = arith.constant 0 : i32
    return %c0_i32, %c0_i32_0 : i32, i32
  }
  func.func @transform_2(%arg0: i32) -> (i32, i32) {
    %c0_i32 = arith.constant 0 : i32
    %c0_i32_0 = arith.constant 0 : i32
    %c0_i32_1 = arith.constant 0 : i32
    return %c0_i32, %c0_i32_0 : i32, i32
  }
  func.func @transform_3(%arg0: i32) -> (i32, i32) {
    %c0_i32 = arith.constant 0 : i32
    %c0_i32_0 = arith.constant 0 : i32
    %c0_i32_1 = arith.constant 0 : i32
    return %c0_i32, %c0_i32_0 : i32, i32
  }
  func.func @transform_4(%arg0: i32) -> (i32, i32) {
    %c0_i32 = arith.constant 0 : i32
    %c0_i32_0 = arith.constant 0 : i32
    %c0_i32_1 = arith.constant 0 : i32
    return %c0_i32, %c0_i32_0 : i32, i32
  }
  func.func @transform_5(%arg0: i32) -> (i32, i32) {
    %c0_i32 = arith.constant 0 : i32
    %c0_i32_0 = arith.constant 0 : i32
    %c0_i32_1 = arith.constant 0 : i32
    return %c0_i32, %c0_i32_0 : i32, i32
  }
  func.func @transform_6(%arg0: i32) -> (i32, i32) {
    %c0_i32 = arith.constant 0 : i32
    %c0_i32_0 = arith.constant 0 : i32
    %c0_i32_1 = arith.constant 0 : i32
    return %c0_i32, %c0_i32_0 : i32, i32
  }
  func.func @transform_7(%arg0: i32) -> (i32, i32) {
    %c0_i32 = arith.constant 0 : i32
    %c0_i32_0 = arith.constant 0 : i32
    return %arg0, %c0_i32 : i32, i32
  }
}

</mosaic_0001>

<llo_original>
// kernel: tpu_custom_call.1
$region0: #{tpu_custom_call.1}
  #allocation0 [shape = 'u32[]', space=smem, size = 0x4, offset = 0x4, fixed_abs, tag = 'smem constant byte address 0x4 - core index']
  #allocation1 [shape = 'u32[144,128]{1,0:T(1,128)}', space=vmem, size = 0x12000, scoped, tag = 'internal scratch']
  %s0 = inlined_call_operand.vmem [shape: f32[64,64], index: 0, kind: input, shape index: {}]
  %s1 = inlined_call_operand.hbm [shape: bf16[64,128], index: 1, kind: input, shape index: {}]
  %s2 = inlined_call_operand.vmem [shape: f32[1,128], index: 2, kind: input, shape index: {}]
  %s3 = inlined_call_operand.hbm [shape: bf16[128,128], index: 3, kind: input, shape index: {}]
  %s4 = inlined_call_operand.vmem [shape: f32[1,128], index: 4, kind: input, shape index: {}]
  %s5 = inlined_call_operand.vmem [shape: bf16[128,8], index: 5, kind: input, shape index: {}]
  %s6 = inlined_call_operand.vmem [shape: f32[1,8], index: 6, kind: input, shape index: {}]
  %s7 = inlined_call_operand.vmem [shape: f32[64,8], index: 7, kind: output, shape index: {}]
  %s8 = sld [smem:[#allocation0]]
  $region46: #{tpu_custom_call.1} parent=0
    _
  %s10 = ssub.s32 1, %s8
  %s11 = scalar_select 0, %s10, %s8
  $region1: #{tpu_custom_call.1} parent=0
    #allocation2 [shape = 'u8[16384]{0}', space=vmem, size = 0x4000, scoped, tag = 'input window, operand 1, single buffered']
    #allocation3 [shape = 's32[1]{0}', space=sflag, size = 0x4, scoped, tag = 'scoped memory for tpu_custom_call.1']
    #allocation4 [shape = 'u8[32768]{0}', space=vmem, size = 0x8000, scoped, tag = 'input window, operand 3, single buffered']
    #allocation5 [shape = 's32[1]{0}', space=sflag, size = 0x4, scoped, tag = 'scoped memory for tpu_custom_call.1']
    %12 = vsyncpa [#allocation3], 0
    %13 = vsyncpa [#allocation5], 0
    // Predicated region
    $region2: #{tpu_custom_call.1} parent=1 // pred_check
      _
    $region3: #{tpu_custom_call.1} parent=1 // pred_check_branch
      %15 = sbr.rel (0) target = $region5
    $region4: #{tpu_custom_call.1} parent=1 // pred_region
      _
    $region5: #{tpu_custom_call.1} parent=1 // pred_fallthru
      _
    // Predicated region
    $region6: #{tpu_custom_call.1} parent=1 // pred_check
      _
    $region7: #{tpu_custom_call.1} parent=1 // pred_check_branch
      %17 = sbr.rel (0) target = $region9
    $region8: #{tpu_custom_call.1} parent=1 // pred_region
      %s19 = ssub.s32 512, 512
      %20 = vsyncadd [#allocation3], %s19
      %s21 = sshll.u32 [#allocation2], 4
      %s22 = int_to_ptr.vmem [resolvable:$true] %s21
      %27 = dma.hbm_to_vmem [thread:$0]  %s1, 512, %s22, [#allocation3], 64, 64, 4
    $region9: #{tpu_custom_call.1} parent=1 // pred_fallthru
      _
    // Predicated region
    $region10: #{tpu_custom_call.1} parent=1 // pred_check
      _
    $region11: #{tpu_custom_call.1} parent=1 // pred_check_branch
      %29 = sbr.rel (0) target = $region13
    $region12: #{tpu_custom_call.1} parent=1 // pred_region
      _
    $region13: #{tpu_custom_call.1} parent=1 // pred_fallthru
      _
    // Predicated region
    $region14: #{tpu_custom_call.1} parent=1 // pred_check
      _
    $region15: #{tpu_custom_call.1} parent=1 // pred_check_branch
      %31 = sbr.rel (0) target = $region17
    $region16: #{tpu_custom_call.1} parent=1 // pred_region
      %s33 = ssub.s32 1024, 1024
      %34 = vsyncadd [#allocation5], %s33
      %s35 = sshll.u32 [#allocation4], 4
      %s36 = int_to_ptr.vmem [resolvable:$true] %s35
      %41 = dma.hbm_to_vmem [thread:$0]  %s3, 1024, %s36, [#allocation5], 64, 64, 4
    $region17: #{tpu_custom_call.1} parent=1 // pred_fallthru
      _
    // Predicated region
    $region18: #{tpu_custom_call.1} parent=1 // pred_check
      _
    $region19: #{tpu_custom_call.1} parent=1 // pred_check_branch
      %43 = sbr.rel (0) target = $region21
    $region20: #{tpu_custom_call.1} parent=1 // pred_region
      _
    $region21: #{tpu_custom_call.1} parent=1 // pred_fallthru
      _
    // Predicated region
    $region22: #{tpu_custom_call.1} parent=1 // pred_check
      _
    $region23: #{tpu_custom_call.1} parent=1 // pred_check_branch
      %45 = sbr.rel (0) target = $region25
    $region24: #{tpu_custom_call.1} parent=1 // pred_region
      _
    $region25: #{tpu_custom_call.1} parent=1 // pred_fallthru
      _
    // Predicated region
    $region26: #{tpu_custom_call.1} parent=1 // pred_check
      _
    $region27: #{tpu_custom_call.1} parent=1 // pred_check_branch
      %47 = sbr.rel (0) target = $region29
    $region28: #{tpu_custom_call.1} parent=1 // pred_region
      _
    $region29: #{tpu_custom_call.1} parent=1 // pred_fallthru
      _
    // Predicated region
    $region30: #{tpu_custom_call.1} parent=1 // pred_check
      _
    $region31: #{tpu_custom_call.1} parent=1 // pred_check_branch
      %49 = sbr.rel (0) target = $region33
    $region32: #{tpu_custom_call.1} parent=1 // pred_region
      %50 = dma.done [#allocation3], 512
    $region33: #{tpu_custom_call.1} parent=1 // pred_fallthru
      _
    // Predicated region
    $region34: #{tpu_custom_call.1} parent=1 // pred_check
      _
    $region35: #{tpu_custom_call.1} parent=1 // pred_check_branch
      %52 = sbr.rel (0) target = $region37
    $region36: #{tpu_custom_call.1} parent=1 // pred_region
      %53 = dma.done [#allocation5], 1024
    $region37: #{tpu_custom_call.1} parent=1 // pred_fallthru
      _
    %v55 = vld [vmem:[%s0] sm:$0xff]
    %v56 = vld [vmem:[%s0 + $0x8] sm:$0xff]
    %v57 = vld [vmem:[%s0 + $0x10] sm:$0xff]
    %v58 = vld [vmem:[%s0 + $0x18] sm:$0xff]
    %v59 = vld [vmem:[%s0 + $0x20] sm:$0xff]
    %v60 = vld [vmem:[%s0 + $0x28] sm:$0xff]
    %v61 = vld [vmem:[%s0 + $0x30] sm:$0xff]
    %v62 = vld [vmem:[%s0 + $0x38] sm:$0xff]
    %v63 = vpack.c.bf16 %v56, %v55
    %v64 = vpack.c.bf16 %v58, %v57
    %v65 = vpack.c.bf16 %v60, %v59
    %v66 = vpack.c.bf16 %v62, %v61
    %v67 = vld [vmem:[#allocation2] sm:$0xf]
    %v68 = vld [vmem:[#allocation2 + $0x4] sm:$0xf]
    %v69 = vld [vmem:[#allocation2 + $0x8] sm:$0xf]
    %v70 = vld [vmem:[#allocation2 + $0xc] sm:$0xf]
    %v71 = vld [vmem:[#allocation2 + $0x10] sm:$0xf]
    %v72 = vld [vmem:[#allocation2 + $0x14] sm:$0xf]
    %v73 = vld [vmem:[#allocation2 + $0x18] sm:$0xf]
    %v74 = vld [vmem:[#allocation2 + $0x1c] sm:$0xf]
    %v75 = vld [vmem:[%s2] sm:$0x1]
    %v77 = vlaneseq
    %v78 = vshrl.u32 %v77, 7
    %v79 = vsub.s32 0, %v78
    %v80 = vrot.slane %v75, %v79
    %v90 = vunpack.c.l.b16 %v67
    %v91 = vunpack.c.l.b16 %v68
    %v92 = vunpack.c.l.b16 %v69
    %v93 = vunpack.c.l.b16 %v70
    %v94 = vunpack.c.l.b16 %v71
    %v95 = vunpack.c.l.b16 %v72
    %v96 = vunpack.c.l.b16 %v73
    %v97 = vunpack.c.l.b16 %v74
    %v98 = vpack.c.b16 %v91, %v90
    %v99 = vpack.c.b16 %v93, %v92
    %v100 = vpack.c.b16 %v95, %v94
    %v101 = vpack.c.b16 %v97, %v96
    %vm106 = vcmask 523264
    %v108 = vsel %vm106, %v63, 0
    %v111 = vsel %vm106, %v64, 0
    %v114 = vsel %vm106, %v65, 0
    %v117 = vsel %vm106, %v66, 0
    %119 = vmatprep.subr.bf16.mxu0 0
    %120 = vmatpush1.bf16.msra.mxu0 %v98
    %121 = vmatprep.subr.bf16.mxu0 0
    %122 = vmatpush1.bf16.msra.mxu0 %v99
    %123 = vmatprep.subr.bf16.mxu0 0
    %124 = vmatpush1.bf16.msra.mxu0 %v100
    %125 = vmatprep.subr.bf16.mxu0 0
    %126 = vmatpush1.bf16.msra.mxu0 %v101
    %127 = vmatprep.subr.bf16.mxu0 0
    %128 = vmatpush1.bf16.msra.mxu0 0
    %129 = vmatprep.subr.bf16.mxu0 0
    %130 = vmatpush1.bf16.msra.mxu0 0
    %131 = vmatprep.subr.bf16.mxu0 0
    %132 = vmatpush1.bf16.msra.mxu0 0
    %133 = vmatprep.subr.bf16.mxu0 0
    %134 = vmatpush1.bf16.msra.mxu0 0
    %135 = vmatprep.subr.bf16.mxu0 0
    %136 = vmatpush1.bf16.msra.mxu0 0
    %137 = vmatprep.subr.bf16.mxu0 0
    %138 = vmatpush1.bf16.msra.mxu0 0
    %139 = vmatprep.subr.bf16.mxu0 0
    %140 = vmatpush1.bf16.msra.mxu0 0
    %141 = vmatprep.subr.bf16.mxu0 0
    %142 = vmatpush1.bf16.msra.mxu0 0
    %143 = vmatprep.subr.bf16.mxu0 0
    %144 = vmatpush1.bf16.msra.mxu0 0
    %145 = vmatprep.subr.bf16.mxu0 0
    %146 = vmatpush1.bf16.msra.mxu0 0
    %147 = vmatprep.subr.bf16.mxu0 0
    %148 = vmatpush1.bf16.msra.mxu0 0
    %149 = vmatprep.subr.bf16.mxu0 0
    %150 = vmatpush1.bf16.msra.mxu0 0
    %151 = vmatprep.mubr.bf16.mxu0 0
    %152 = vmatmul.mubr.bf16.gmra.mrb[0].mxu0 %v108
    %v153 = vpop.f32.mrb[0].mxu0
    %v154 = vadd.f32 %v80, %v153
    %v155 = vpop.f32.mrb[0].mxu0
    %v156 = vpop.f32.mrb[0].mxu0
    %v157 = vadd.f32 %v80, %v156
    %v158 = vpop.f32.mrb[0].mxu0
    %159 = vmatprep.mubr.bf16.mxu0 0
    %160 = vmatmul.mubr.bf16.gmra.mrb[0].mxu0 %v111
    %v161 = vpop.f32.mrb[0].mxu0
    %v162 = vadd.f32 %v80, %v161
    %v163 = vpop.f32.mrb[0].mxu0
    %v164 = vpop.f32.mrb[0].mxu0
    %v165 = vadd.f32 %v80, %v164
    %v166 = vpop.f32.mrb[0].mxu0
    %167 = vmatprep.mubr.bf16.mxu0 0
    %168 = vmatmul.mubr.bf16.gmra.mrb[0].mxu0 %v114
    %v169 = vpop.f32.mrb[0].mxu0
    %v170 = vadd.f32 %v80, %v169
    %v171 = vpop.f32.mrb[0].mxu0
    %v172 = vpop.f32.mrb[0].mxu0
    %v173 = vadd.f32 %v80, %v172
    %v174 = vpop.f32.mrb[0].mxu0
    %175 = vmatprep.mubr.bf16.mxu0 0
    %176 = vmatmul.mubr.bf16.gmra.mrb[0].mxu0 %v117
    %v177 = vpop.f32.mrb[0].mxu0
    %v178 = vadd.f32 %v80, %v177
    %v179 = vpop.f32.mrb[0].mxu0
    %v180 = vpop.f32.mrb[0].mxu0
    %v181 = vadd.f32 %v80, %v180
    %v182 = vpop.f32.mrb[0].mxu0
    %183 = vdwg.mxu0
    %v184 = vtanh.pop %v154
    %v185 = vtanh.pop %v157
    %v186 = vtanh.pop %v162
    %v187 = vtanh.pop %v165
    %v188 = vtanh.pop %v170
    %v189 = vtanh.pop %v173
    %v190 = vtanh.pop %v178
    %v191 = vtanh.pop %v181
    %v192 = vpack.c.bf16 %v185, %v184
    %v193 = vpack.c.bf16 %v187, %v186
    %v194 = vpack.c.bf16 %v189, %v188
    %v195 = vpack.c.bf16 %v191, %v190
    %v196 = vld [vmem:[#allocation4] sm:$0xf]
    %v197 = vld [vmem:[#allocation4 + $0x4] sm:$0xf]
    %v198 = vld [vmem:[#allocation4 + $0x8] sm:$0xf]
    %v199 = vld [vmem:[#allocation4 + $0xc] sm:$0xf]
    %v200 = vld [vmem:[#allocation4 + $0x10] sm:$0xf]
    %v201 = vld [vmem:[#allocation4 + $0x14] sm:$0xf]
    %v202 = vld [vmem:[#allocation4 + $0x18] sm:$0xf]
    %v203 = vld [vmem:[#allocation4 + $0x1c] sm:$0xf]
    %v204 = vld [vmem:[#allocation4 + $0x20] sm:$0xf]
    %v205 = vld [vmem:[#allocation4 + $0x24] sm:$0xf]
    %v206 = vld [vmem:[#allocation4 + $0x28] sm:$0xf]
    %v207 = vld [vmem:[#allocation4 + $0x2c] sm:$0xf]
    %v208 = vld [vmem:[#allocation4 + $0x30] sm:$0xf]
    %v209 = vld [vmem:[#allocation4 + $0x34] sm:$0xf]
    %v210 = vld [vmem:[#allocation4 + $0x38] sm:$0xf]
    %v211 = vld [vmem:[#allocation4 + $0x3c] sm:$0xf]
    %v212 = vld [vmem:[%s4] sm:$0x1]
    %v214 = vlaneseq
    %v215 = vshrl.u32 %v214, 7
    %v216 = vsub.s32 0, %v215
    %v217 = vrot.slane %v212, %v216
    %v235 = vunpack.c.l.b16 %v196
    %v236 = vunpack.c.l.b16 %v197
    %v237 = vunpack.c.l.b16 %v198
    %v238 = vunpack.c.l.b16 %v199
    %v239 = vunpack.c.l.b16 %v200
    %v240 = vunpack.c.l.b16 %v201
    %v241 = vunpack.c.l.b16 %v202
    %v242 = vunpack.c.l.b16 %v203
    %v243 = vunpack.c.l.b16 %v204
    %v244 = vunpack.c.l.b16 %v205
    %v245 = vunpack.c.l.b16 %v206
    %v246 = vunpack.c.l.b16 %v207
    %v247 = vunpack.c.l.b16 %v208
    %v248 = vunpack.c.l.b16 %v209
    %v249 = vunpack.c.l.b16 %v210
    %v250 = vunpack.c.l.b16 %v211
    %v251 = vpack.c.b16 %v236, %v235
    %v252 = vpack.c.b16 %v238, %v237
    %v253 = vpack.c.b16 %v240, %v239
    %v254 = vpack.c.b16 %v242, %v241
    %v255 = vpack.c.b16 %v244, %v243
    %v256 = vpack.c.b16 %v246, %v245
    %v257 = vpack.c.b16 %v248, %v247
    %v258 = vpack.c.b16 %v250, %v249
    %267 = vmatprep.subr.bf16.mxu0 0
    %268 = vmatpush1.bf16.msra.mxu0 %v251
    %269 = vmatprep.subr.bf16.mxu0 0
    %270 = vmatpush1.bf16.msra.mxu0 %v252
    %271 = vmatprep.subr.bf16.mxu0 0
    %272 = vmatpush1.bf16.msra.mxu0 %v253
    %273 = vmatprep.subr.bf16.mxu0 0
    %274 = vmatpush1.bf16.msra.mxu0 %v254
    %275 = vmatprep.subr.bf16.mxu0 0
    %276 = vmatpush1.bf16.msra.mxu0 %v255
    %277 = vmatprep.subr.bf16.mxu0 0
    %278 = vmatpush1.bf16.msra.mxu0 %v256
    %279 = vmatprep.subr.bf16.mxu0 0
    %280 = vmatpush1.bf16.msra.mxu0 %v257
    %281 = vmatprep.subr.bf16.mxu0 0
    %282 = vmatpush1.bf16.msra.mxu0 %v258
    %283 = vmatprep.subr.bf16.mxu0 0
    %284 = vmatpush1.bf16.msra.mxu0 0
    %285 = vmatprep.subr.bf16.mxu0 0
    %286 = vmatpush1.bf16.msra.mxu0 0
    %287 = vmatprep.subr.bf16.mxu0 0
    %288 = vmatpush1.bf16.msra.mxu0 0
    %289 = vmatprep.subr.bf16.mxu0 0
    %290 = vmatpush1.bf16.msra.mxu0 0
    %291 = vmatprep.subr.bf16.mxu0 0
    %292 = vmatpush1.bf16.msra.mxu0 0
    %293 = vmatprep.subr.bf16.mxu0 0
    %294 = vmatpush1.bf16.msra.mxu0 0
    %295 = vmatprep.subr.bf16.mxu0 0
    %296 = vmatpush1.bf16.msra.mxu0 0
    %297 = vmatprep.subr.bf16.mxu0 0
    %298 = vmatpush1.bf16.msra.mxu0 0
    %299 = vmatprep.mubr.bf16.mxu0 0
    %300 = vmatmul.mubr.bf16.gmra.mrb[0].mxu0 %v192
    %v301 = vpop.f32.mrb[0].mxu0
    %v302 = vadd.f32 %v217, %v301
    %v303 = vpop.f32.mrb[0].mxu0
    %v304 = vpop.f32.mrb[0].mxu0
    %v305 = vadd.f32 %v217, %v304
    %v306 = vpop.f32.mrb[0].mxu0
    %307 = vmatprep.mubr.bf16.mxu0 0
    %308 = vmatmul.mubr.bf16.gmra.mrb[0].mxu0 %v193
    %v309 = vpop.f32.mrb[0].mxu0
    %v310 = vadd.f32 %v217, %v309
    %v311 = vpop.f32.mrb[0].mxu0
    %v312 = vpop.f32.mrb[0].mxu0
    %v313 = vadd.f32 %v217, %v312
    %v314 = vpop.f32.mrb[0].mxu0
    %315 = vmatprep.mubr.bf16.mxu0 0
    %316 = vmatmul.mubr.bf16.gmra.mrb[0].mxu0 %v194
    %v317 = vpop.f32.mrb[0].mxu0
    %v318 = vadd.f32 %v217, %v317
    %v319 = vpop.f32.mrb[0].mxu0
    %v320 = vpop.f32.mrb[0].mxu0
    %v321 = vadd.f32 %v217, %v320
    %v322 = vpop.f32.mrb[0].mxu0
    %323 = vmatprep.mubr.bf16.mxu0 0
    %324 = vmatmul.mubr.bf16.gmra.mrb[0].mxu0 %v195
    %v325 = vpop.f32.mrb[0].mxu0
    %v326 = vadd.f32 %v217, %v325
    %v327 = vpop.f32.mrb[0].mxu0
    %v328 = vpop.f32.mrb[0].mxu0
    %v329 = vadd.f32 %v217, %v328
    %v330 = vpop.f32.mrb[0].mxu0
    %331 = vdwg.mxu0
    %v332 = vtanh.pop %v302
    %v333 = vtanh.pop %v305
    %v334 = vtanh.pop %v310
    %v335 = vtanh.pop %v313
    %v336 = vtanh.pop %v318
    %v337 = vtanh.pop %v321
    %v338 = vtanh.pop %v326
    %v339 = vtanh.pop %v329
    %v340 = vpack.c.bf16 %v333, %v332
    %v341 = vpack.c.bf16 %v335, %v334
    %v342 = vpack.c.bf16 %v337, %v336
    %v343 = vpack.c.bf16 %v339, %v338
    %v344 = vld [vmem:[%s5] sm:$0xf]
    %v345 = vld [vmem:[%s5 + $0x4] sm:$0xf]
    %v346 = vld [vmem:[%s5 + $0x8] sm:$0xf]
    %v347 = vld [vmem:[%s5 + $0xc] sm:$0xf]
    %v348 = vld [vmem:[%s5 + $0x10] sm:$0xf]
    %v349 = vld [vmem:[%s5 + $0x14] sm:$0xf]
    %v350 = vld [vmem:[%s5 + $0x18] sm:$0xf]
    %v351 = vld [vmem:[%s5 + $0x1c] sm:$0xf]
    %v352 = vld [vmem:[%s5 + $0x20] sm:$0xf]
    %v353 = vld [vmem:[%s5 + $0x24] sm:$0xf]
    %v354 = vld [vmem:[%s5 + $0x28] sm:$0xf]
    %v355 = vld [vmem:[%s5 + $0x2c] sm:$0xf]
    %v356 = vld [vmem:[%s5 + $0x30] sm:$0xf]
    %v357 = vld [vmem:[%s5 + $0x34] sm:$0xf]
    %v358 = vld [vmem:[%s5 + $0x38] sm:$0xf]
    %v359 = vld [vmem:[%s5 + $0x3c] sm:$0xf]
    %v360 = vld [vmem:[%s6] sm:$0x1]
    %v362 = vlaneseq
    %v363 = vshrl.u32 %v362, 7
    %v364 = vsub.s32 0, %v363
    %v365 = vrot.slane %v360, %v364
    %v383 = vunpack.c.l.b16 %v344
    %v384 = vunpack.c.l.b16 %v345
    %v385 = vunpack.c.l.b16 %v346
    %v386 = vunpack.c.l.b16 %v347
    %v387 = vunpack.c.l.b16 %v348
    %v388 = vunpack.c.l.b16 %v349
    %v389 = vunpack.c.l.b16 %v350
    %v390 = vunpack.c.l.b16 %v351
    %v391 = vunpack.c.l.b16 %v352
    %v392 = vunpack.c.l.b16 %v353
    %v393 = vunpack.c.l.b16 %v354
    %v394 = vunpack.c.l.b16 %v355
    %v395 = vunpack.c.l.b16 %v356
    %v396 = vunpack.c.l.b16 %v357
    %v397 = vunpack.c.l.b16 %v358
    %v398 = vunpack.c.l.b16 %v359
    %v399 = vpack.c.b16 %v384, %v383
    %v400 = vpack.c.b16 %v386, %v385
    %v401 = vpack.c.b16 %v388, %v387
    %v402 = vpack.c.b16 %v390, %v389
    %v403 = vpack.c.b16 %v392, %v391
    %v404 = vpack.c.b16 %v394, %v393
    %v405 = vpack.c.b16 %v396, %v395
    %v406 = vpack.c.b16 %v398, %v397
    %415 = vmatprep.subr.bf16.mxu0 0
    %416 = vmatpush1.bf16.msra.mxu0 %v399
    %417 = vmatprep.subr.bf16.mxu0 0
    %418 = vmatpush1.bf16.msra.mxu0 %v400
    %419 = vmatprep.subr.bf16.mxu0 0
    %420 = vmatpush1.bf16.msra.mxu0 %v401
    %421 = vmatprep.subr.bf16.mxu0 0
    %422 = vmatpush1.bf16.msra.mxu0 %v402
    %423 = vmatprep.subr.bf16.mxu0 0
    %424 = vmatpush1.bf16.msra.mxu0 %v403
    %425 = vmatprep.subr.bf16.mxu0 0
    %426 = vmatpush1.bf16.msra.mxu0 %v404
    %427 = vmatprep.subr.bf16.mxu0 0
    %428 = vmatpush1.bf16.msra.mxu0 %v405
    %429 = vmatprep.subr.bf16.mxu0 0
    %430 = vmatpush1.bf16.msra.mxu0 %v406
    %431 = vmatprep.subr.bf16.mxu0 0
    %432 = vmatpush1.bf16.msra.mxu0 0
    %433 = vmatprep.subr.bf16.mxu0 0
    %434 = vmatpush1.bf16.msra.mxu0 0
    %435 = vmatprep.subr.bf16.mxu0 0
    %436 = vmatpush1.bf16.msra.mxu0 0
    %437 = vmatprep.subr.bf16.mxu0 0
    %438 = vmatpush1.bf16.msra.mxu0 0
    %439 = vmatprep.subr.bf16.mxu0 0
    %440 = vmatpush1.bf16.msra.mxu0 0
    %441 = vmatprep.subr.bf16.mxu0 0
    %442 = vmatpush1.bf16.msra.mxu0 0
    %443 = vmatprep.subr.bf16.mxu0 0
    %444 = vmatpush1.bf16.msra.mxu0 0
    %445 = vmatprep.subr.bf16.mxu0 0
    %446 = vmatpush1.bf16.msra.mxu0 0
    %447 = vmatprep.mubr.bf16.mxu0 0
    %448 = vmatmul.mubr.bf16.gmra.mrb[0].mxu0 %v340
    %v449 = vpop.f32.mrb[0].mxu0
    %v450 = vadd.f32 %v365, %v449
    %v451 = vpop.f32.mrb[0].mxu0
    %v452 = vpop.f32.mrb[0].mxu0
    %v453 = vadd.f32 %v365, %v452
    %v454 = vpop.f32.mrb[0].mxu0
    %455 = vmatprep.mubr.bf16.mxu0 0
    %456 = vmatmul.mubr.bf16.gmra.mrb[0].mxu0 %v341
    %v457 = vpop.f32.mrb[0].mxu0
    %v458 = vadd.f32 %v365, %v457
    %v459 = vpop.f32.mrb[0].mxu0
    %v460 = vpop.f32.mrb[0].mxu0
    %v461 = vadd.f32 %v365, %v460
    %v462 = vpop.f32.mrb[0].mxu0
    %463 = vmatprep.mubr.bf16.mxu0 0
    %464 = vmatmul.mubr.bf16.gmra.mrb[0].mxu0 %v342
    %v465 = vpop.f32.mrb[0].mxu0
    %v466 = vadd.f32 %v365, %v465
    %v467 = vpop.f32.mrb[0].mxu0
    %v468 = vpop.f32.mrb[0].mxu0
    %v469 = vadd.f32 %v365, %v468
    %v470 = vpop.f32.mrb[0].mxu0
    %471 = vmatprep.mubr.bf16.mxu0 0
    %472 = vmatmul.mubr.bf16.gmra.mrb[0].mxu0 %v343
    %v473 = vpop.f32.mrb[0].mxu0
    %v474 = vadd.f32 %v365, %v473
    %v475 = vpop.f32.mrb[0].mxu0
    %v476 = vpop.f32.mrb[0].mxu0
    %v477 = vadd.f32 %v365, %v476
    %v478 = vpop.f32.mrb[0].mxu0
    %479 = vdwg.mxu0
    %vm480 = vcmask 64512
    %481 = vst.msk [vmem:[%s7] sm:$0xff] %vm480, %v450
    %482 = vst.msk [vmem:[%s7 + $0x8] sm:$0xff] %vm480, %v453
    %483 = vst.msk [vmem:[%s7 + $0x10] sm:$0xff] %vm480, %v458
    %484 = vst.msk [vmem:[%s7 + $0x18] sm:$0xff] %vm480, %v461
    %485 = vst.msk [vmem:[%s7 + $0x20] sm:$0xff] %vm480, %v466
    %486 = vst.msk [vmem:[%s7 + $0x28] sm:$0xff] %vm480, %v469
    %487 = vst.msk [vmem:[%s7 + $0x30] sm:$0xff] %vm480, %v474
    %488 = vst.msk [vmem:[%s7 + $0x38] sm:$0xff] %vm480, %v477
    // Predicated region
    $region38: #{tpu_custom_call.1} parent=1 // pred_check
      _
    $region39: #{tpu_custom_call.1} parent=1 // pred_check_branch
      %490 = sbr.rel (0) target = $region41
    $region40: #{tpu_custom_call.1} parent=1 // pred_region
      _
    $region41: #{tpu_custom_call.1} parent=1 // pred_fallthru
      _
    // Predicated region
    $region42: #{tpu_custom_call.1} parent=1 // pred_check
      _
    $region43: #{tpu_custom_call.1} parent=1 // pred_check_branch
      %492 = sbr.rel (0) target = $region45
    $region44: #{tpu_custom_call.1} parent=1 // pred_region
      _
    $region45: #{tpu_custom_call.1} parent=1 // pred_fallthru
      _
    %493 = vsyncpa [#allocation3], 1
    %494 = vsyncpa [#allocation5], 1

</llo_original>
